<compile_context>
chip_gen: v7x
topology: tpu7x:2x2x1
jax: 0.10.0
libtpu: 0.0.40
codegen_flags: <defaults>
</compile_context>

<pallas_src>
import functools

import jax
import jax.numpy as jnp
from jax import lax
from jax.experimental import pallas as pl
from jax.experimental.pallas import tpu as pltpu

HIDDEN = 128       # per-branch hidden width (nn.Linear(s_dim, 128))
OUT_LANES = 128    # lane-dense combined output width (logits | value | padding)


def _net_kernel(x_ref, w1_ref, b1_ref, w2_ref, b2_ref, out_ref):
    x = x_ref[...]                                                    # (TB, S)

    # Fused first layer: one wide matmul feeding both branches.
    h = (jnp.dot(x, w1_ref[...], preferred_element_type=jnp.float32)
         + b1_ref[...])                                               # (TB, 256)

    # Split exactly at lane 128 (vreg lane-width boundary): slices/concat are
    # free vreg-boundary views, and each transcendental only runs on the lanes
    # that need it (halves EUP work vs. a full-width where-select).
    h_pi = jnp.tan(h[:, :HIDDEN])                                     # policy: torch.tan
    h_v = jnp.tanh(h[:, HIDDEN:])                                     # value:  torch.tanh
    h_act = jnp.concatenate([h_pi, h_v], axis=1)                      # (TB, 256)

    # Fused second layer: block-diagonal weight -> lane-dense output slab.
    out_ref[...] = (jnp.dot(h_act, w2_ref[...],
                            preferred_element_type=jnp.float32)
                    + b2_ref[...])                                    # (TB, 128)


def fuse_params(params):
    """One-time fusion of the 4 Linear layers. Call once per parameter update;
    pass the fused tensors into net_forward (keeps concat/scatter ops off the
    per-step path)."""
    a_dim = params["w_pi2"].shape[1]
    assert a_dim + 1 <= OUT_LANES

    # First layer: (S, 2H) weight, (1, 2H) bias.
    w1 = jnp.concatenate([params["w_pi1"], params["w_v1"]], axis=1)
    b1 = jnp.concatenate([params["b_pi1"], params["b_v1"]], axis=1)

    # Second layer: block-diagonal (2H, 128):
    #   rows [0,H)  x cols [0,a_dim) -> logits from pi1
    #   rows [H,2H) x col  a_dim     -> value  from v1
    w2 = jnp.zeros((2 * HIDDEN, OUT_LANES), jnp.float32)
    w2 = w2.at[:HIDDEN, :a_dim].set(params["w_pi2"])
    w2 = w2.at[HIDDEN:, a_dim:a_dim + 1].set(params["w_v2"])
    b2 = jnp.zeros((1, OUT_LANES), jnp.float32)
    b2 = b2.at[:, :a_dim].set(params["b_pi2"])
    b2 = b2.at[:, a_dim:a_dim + 1].set(params["b_v2"])
    return (w1, b1, w2, b2), a_dim


def _round_up(n, m):
    return ((n + m - 1) // m) * m


def _choose_tile(batch, block_b):
    """Largest batch tile <= block_b, with an even grid length when the batch
    is big enough so the 'parallel' axis splits evenly across v7x's two
    TensorCores (no-op on single-TC v5e/v6e)."""
    if batch <= 8:
        return 8
    n_steps = max(1, pl.cdiv(batch, block_b))
    if n_steps > 1 and n_steps % 2:
        n_steps += 1        # avoid a 2/1 core split on v7x
    elif n_steps == 1 and batch >= 256:
        n_steps = 2         # give the second TensorCore work on medium batches
    return _round_up(pl.cdiv(batch, n_steps), 8)


@functools.partial(jax.jit, static_argnames=("a_dim", "block_b"))
def net_forward(x, w1, b1, w2, b2, *, a_dim, block_b=1024):
    """x: (B, s_dim) float32. Returns (logits (B, a_dim), values (B, 1))."""
    B, S = x.shape
    tb = _choose_tile(B, block_b)
    grid = (pl.cdiv(B, tb),)   # ragged last block handled by Pallas (no jnp.pad)

    def const_spec(shape):
        return pl.BlockSpec(shape, lambda i: (0,) * len(shape))

    out = pl.pallas_call(
        _net_kernel,
        out_shape=jax.ShapeDtypeStruct((B, OUT_LANES), jnp.float32),
        grid=grid,
        in_specs=[
            pl.BlockSpec((tb, S), lambda i: (i, 0)),   # x tiled over batch
            const_spec(w1.shape),                      # weights stay resident
            const_spec(b1.shape),
            const_spec(w2.shape),
            const_spec(b2.shape),
        ],
        out_specs=pl.BlockSpec((tb, OUT_LANES), lambda i: (i, 0)),
        compiler_params=pltpu.CompilerParams(
            dimension_semantics=("parallel",)),
    )(x, w1, b1, w2, b2)

    # Single narrow slice of the lane-dense slab, then split logits / value.
    head = lax.slice(out, (0, 0), (B, a_dim + 1))
    return head[:, :a_dim], head[:, a_dim:a_dim + 1]


def init_params(key, s_dim, a_dim, hidden=HIDDEN):
    """Matches set_init: weights ~ N(0, 0.1), biases = 0. Weights stored (in, out)."""
    k1, k2, k3, k4 = jax.random.split(key, 4)
    std = 0.1
    return {
        "w_pi1": std * jax.random.normal(k1, (s_dim, hidden), jnp.float32),
        "b_pi1": jnp.zeros((1, hidden), jnp.float32),
        "w_pi2": std * jax.random.normal(k2, (hidden, a_dim), jnp.float32),
        "b_pi2": jnp.zeros((1, a_dim), jnp.float32),
        "w_v1":  std * jax.random.normal(k3, (s_dim, hidden), jnp.float32),
        "b_v1":  jnp.zeros((1, hidden), jnp.float32),
        "w_v2":  std * jax.random.normal(k4, (hidden, 1), jnp.float32),
        "b_v2":  jnp.zeros((1, 1), jnp.float32),
    }


def _reference_forward(x, p):
    pi1 = jnp.tan(x @ p["w_pi1"] + p["b_pi1"])
    logits = pi1 @ p["w_pi2"] + p["b_pi2"]
    v1 = jnp.tanh(x @ p["w_v1"] + p["b_v1"])
    values = v1 @ p["w_v2"] + p["b_v2"]
    return logits, values


if __name__ == "__main__":
    key = jax.random.PRNGKey(0)
    kx, kp = jax.random.split(key)

    B, S_DIM, A_DIM = 8, 16, 4
    x = jax.random.normal(kx, (B, S_DIM), jnp.float32)
    params = init_params(kp, S_DIM, A_DIM)

    # Fuse the 4 Linear layers ONCE (hoisted out of the per-call path).
    (w1, b1, w2, b2), a_dim = fuse_params(params)
    fused = jax.block_until_ready((w1, b1, w2, b2))

    # Small batch (single grid step).
    logits, values = net_forward(x, *fused, a_dim=a_dim)
    jax.block_until_ready((logits, values))
    ref_logits, ref_values = _reference_forward(x, params)
    assert logits.shape == (B, A_DIM) and values.shape == (B, 1)
    assert jnp.allclose(logits, ref_logits, atol=1e-4, rtol=1e-4)
    assert jnp.allclose(values, ref_values, atol=1e-4, rtol=1e-4)

    # Medium batch: even 2-step grid (v7x core balance) with ragged last block.
    B2 = 520
    x2 = jax.random.normal(jax.random.PRNGKey(7), (B2, S_DIM), jnp.float32)
    l2, v2 = net_forward(x2, *fused, a_dim=a_dim)
    jax.block_until_ready((l2, v2))
    rl2, rv2 = _reference_forward(x2, params)
    assert jnp.allclose(l2, rl2, atol=1e-4, rtol=1e-4)
    assert jnp.allclose(v2, rv2, atol=1e-4, rtol=1e-4)

    # Large batch: multi-step grid rounded up to an even step count.
    B3 = 2600
    x3 = jax.random.normal(jax.random.PRNGKey(11), (B3, S_DIM), jnp.float32)
    l3, v3 = net_forward(x3, *fused, a_dim=a_dim)
    jax.block_until_ready((l3, v3))
    rl3, rv3 = _reference_forward(x3, params)
    assert jnp.allclose(l3, rl3, atol=1e-4, rtol=1e-4)
    assert jnp.allclose(v3, rv3, atol=1e-4, rtol=1e-4)

    print("KERNEL_OK")
</pallas_src>

<mosaic_0001>
module attributes {stable_mosaic.version = 11 : i64} {
  func.func @_net_kernel(%arg0: i32, %arg1: memref<8x16xf32, #tpu.memory_space<vmem>>, %arg2: memref<16x256xf32, #tpu.memory_space<vmem>>, %arg3: memref<1x256xf32, #tpu.memory_space<vmem>>, %arg4: memref<256x128xf32, #tpu.memory_space<vmem>>, %arg5: memref<1x128xf32, #tpu.memory_space<vmem>>, %arg6: memref<8x128xf32, #tpu.memory_space<vmem>>) attributes {dimension_semantics = [#tpu.dimension_semantics<parallel>], iteration_bounds = array<i64: 1>, scalar_prefetch = 0 : i64, scratch_operands = 0 : i64, tpu.core_type = #tpu.core_type<tc>, window_params = [{transform_indices = @transform_0, window_bounds = array<i64: 8, 16>}, {pipeline_mode = #tpu.pipeline_mode<synchronous>, transform_indices = @transform_1, window_bounds = array<i64: 16, 256>}, {pipeline_mode = #tpu.pipeline_mode<synchronous>, transform_indices = @transform_2, window_bounds = array<i64: 1, 256>}, {pipeline_mode = #tpu.pipeline_mode<synchronous>, transform_indices = @transform_3, window_bounds = array<i64: 256, 128>}, {pipeline_mode = #tpu.pipeline_mode<synchronous>, transform_indices = @transform_4, window_bounds = array<i64: 1, 128>}, {transform_indices = @transform_5, window_bounds = array<i64: 8, 128>}]} {
    %c0 = arith.constant 0 : index
    %c0_0 = arith.constant 0 : index
    %0 = vector.load %arg1[%c0, %c0_0] : memref<8x16xf32, #tpu.memory_space<vmem>>, vector<8x16xf32>
    %c0_1 = arith.constant 0 : index
    %c0_2 = arith.constant 0 : index
    %1 = vector.load %arg2[%c0_1, %c0_2] : memref<16x256xf32, #tpu.memory_space<vmem>>, vector<16x256xf32>
    %cst = arith.constant dense<0.000000e+00> : vector<8x256xf32>
    %2 = tpu.matmul %0, %1, %cst {dimension_numbers = #tpu.dot_dimension_numbers<[1], [0], [0], [1], [0, 0, 1, 1], [], []>} : vector<8x16xf32>, vector<16x256xf32>, vector<8x256xf32> -> vector<8x256xf32>
    %c0_3 = arith.constant 0 : index
    %c0_4 = arith.constant 0 : index
    %3 = vector.load %arg3[%c0_3, %c0_4] : memref<1x256xf32, #tpu.memory_space<vmem>>, vector<1x256xf32>
    %4 = vector.broadcast %3 : vector<1x256xf32> to vector<8x256xf32>
    %5 = arith.addf %2, %4 : vector<8x256xf32>
    %6 = vector.extract_strided_slice %5 {offsets = [0, 0], sizes = [8, 128], strides = [1, 1]} : vector<8x256xf32> to vector<8x128xf32>
    %7 = math.tan %6 : vector<8x128xf32>
    %8 = vector.extract_strided_slice %5 {offsets = [0, 128], sizes = [8, 128], strides = [1, 1]} : vector<8x256xf32> to vector<8x128xf32>
    %9 = math.tanh %8 : vector<8x128xf32>
    %10 = tpu.concatenate %7, %9 in 1 : vector<8x128xf32>, vector<8x128xf32> -> vector<8x256xf32>
    %c0_5 = arith.constant 0 : index
    %c0_6 = arith.constant 0 : index
    %11 = vector.load %arg4[%c0_5, %c0_6] : memref<256x128xf32, #tpu.memory_space<vmem>>, vector<256x128xf32>
    %cst_7 = arith.constant dense<0.000000e+00> : vector<8x128xf32>
    %12 = tpu.matmul %10, %11, %cst_7 {dimension_numbers = #tpu.dot_dimension_numbers<[1], [0], [0], [1], [0, 0, 1, 1], [], []>} : vector<8x256xf32>, vector<256x128xf32>, vector<8x128xf32> -> vector<8x128xf32>
    %c0_8 = arith.constant 0 : index
    %c0_9 = arith.constant 0 : index
    %13 = vector.load %arg5[%c0_8, %c0_9] : memref<1x128xf32, #tpu.memory_space<vmem>>, vector<1x128xf32>
    %14 = vector.broadcast %13 : vector<1x128xf32> to vector<8x128xf32>
    %15 = arith.addf %12, %14 : vector<8x128xf32>
    %c0_10 = arith.constant 0 : index
    %c0_11 = arith.constant 0 : index
    %16 = vector.load %arg6[%c0_10, %c0_11] : memref<8x128xf32, #tpu.memory_space<vmem>>, vector<8x128xf32>
    tpu.vector_store %arg6[%c0_10, %c0_11], %15 {strides = array<i32>} : memref<8x128xf32, #tpu.memory_space<vmem>>, vector<8x128xf32>,
    return
  }
  func.func @transform_0(%arg0: i32) -> (i32, i32) {
    %c0_i32 = arith.constant 0 : i32
    %c0_i32_0 = arith.constant 0 : i32
    return %arg0, %c0_i32 : i32, i32
  }
  func.func @transform_1(%arg0: i32) -> (i32, i32) {
    %c0_i32 = arith.constant 0 : i32
    %c0_i32_0 = arith.constant 0 : i32
    %c0_i32_1 = arith.constant 0 : i32
    return %c0_i32, %c0_i32_0 : i32, i32
  }
  func.func @transform_2(%arg0: i32) -> (i32, i32) {
    %c0_i32 = arith.constant 0 : i32
    %c0_i32_0 = arith.constant 0 : i32
    %c0_i32_1 = arith.constant 0 : i32
    return %c0_i32, %c0_i32_0 : i32, i32
  }
  func.func @transform_3(%arg0: i32) -> (i32, i32) {
    %c0_i32 = arith.constant 0 : i32
    %c0_i32_0 = arith.constant 0 : i32
    %c0_i32_1 = arith.constant 0 : i32
    return %c0_i32, %c0_i32_0 : i32, i32
  }
  func.func @transform_4(%arg0: i32) -> (i32, i32) {
    %c0_i32 = arith.constant 0 : i32
    %c0_i32_0 = arith.constant 0 : i32
    %c0_i32_1 = arith.constant 0 : i32
    return %c0_i32, %c0_i32_0 : i32, i32
  }
  func.func @transform_5(%arg0: i32) -> (i32, i32) {
    %c0_i32 = arith.constant 0 : i32
    %c0_i32_0 = arith.constant 0 : i32
    return %arg0, %c0_i32 : i32, i32
  }
}

</mosaic_0001>

<llo_original>
// kernel: net_forward.1
$region0: #{net_forward.1}
  #allocation0 [shape = 'u32[]', space=smem, size = 0x4, offset = 0x4, fixed_abs, tag = 'smem constant byte address 0x4 - core index']
  #allocation1 [shape = 'u32[144,128]{1,0:T(1,128)}', space=vmem, size = 0x12000, scoped, tag = 'internal scratch']
  %s0 = inlined_call_operand.hbm [shape: f32[8,16], index: 0, kind: input, shape index: {}]
  %s1 = inlined_call_operand.hbm [shape: f32[16,256], index: 1, kind: input, shape index: {}]
  %s2 = inlined_call_operand.vmem [shape: f32[1,256], index: 2, kind: input, shape index: {}]
  %s3 = inlined_call_operand.hbm [shape: f32[256,128], index: 3, kind: input, shape index: {}]
  %s4 = inlined_call_operand.vmem [shape: f32[1,128], index: 4, kind: input, shape index: {}]
  %s5 = inlined_call_operand.vmem [shape: f32[8,128], index: 5, kind: output, shape index: {}]
  %s6 = sld [smem:[#allocation0]]
  $region42: #{net_forward.1} parent=0
    _
  %s8 = ssub.s32 1, %s6
  %s9 = scalar_select 0, %s8, %s6
  $region1: #{net_forward.1} parent=0
    #allocation2 [shape = 'u8[4096]{0}', space=vmem, size = 0x1000, scoped, tag = 'input window, operand 0, single buffered']
    #allocation3 [shape = 's32[1]{0}', space=sflag, size = 0x4, scoped, tag = 'scoped memory for net_forward.1']
    #allocation4 [shape = 'u8[16384]{0}', space=vmem, size = 0x4000, scoped, tag = 'input window, operand 1, single buffered']
    #allocation5 [shape = 's32[1]{0}', space=sflag, size = 0x4, scoped, tag = 'scoped memory for net_forward.1']
    #allocation6 [shape = 'u8[131072]{0}', space=vmem, size = 0x20000, scoped, tag = 'input window, operand 3, single buffered']
    %10 = vsyncpa [#allocation3], 0
    %11 = vsyncpa [#allocation5], 0
    // Predicated region
    $region2: #{net_forward.1} parent=1 // pred_check
      _
    $region3: #{net_forward.1} parent=1 // pred_check_branch
      %13 = sbr.rel (0) target = $region5
    $region4: #{net_forward.1} parent=1 // pred_region
      %s15 = ssub.s32 128, 128
      %16 = vsyncadd [#allocation3], %s15
      %s18 = sshll.u32 [#allocation2], 4
      %s19 = int_to_ptr.vmem [resolvable:$true] %s18
      %21 = dma.hbm_to_vmem [thread:$0]  %s0, 128, %s19, [#allocation3]
    $region5: #{net_forward.1} parent=1 // pred_fallthru
      _
    // Predicated region
    $region6: #{net_forward.1} parent=1 // pred_check
      _
    $region7: #{net_forward.1} parent=1 // pred_check_branch
      %23 = sbr.rel (0) target = $region9
    $region8: #{net_forward.1} parent=1 // pred_region
      %s25 = ssub.s32 512, 512
      %26 = vsyncadd [#allocation5], %s25
      %s27 = sshll.u32 [#allocation4], 4
      %s28 = int_to_ptr.vmem [resolvable:$true] %s27
      %33 = dma.hbm_to_vmem [thread:$0]  %s1, 512, %s28, [#allocation5], 256, 256, 16
    $region9: #{net_forward.1} parent=1 // pred_fallthru
      _
    // Predicated region
    $region10: #{net_forward.1} parent=1 // pred_check
      _
    $region11: #{net_forward.1} parent=1 // pred_check_branch
      %35 = sbr.rel (0) target = $region13
    $region12: #{net_forward.1} parent=1 // pred_region
      _
    $region13: #{net_forward.1} parent=1 // pred_fallthru
      _
    // Predicated region
    $region14: #{net_forward.1} parent=1 // pred_check
      _
    $region15: #{net_forward.1} parent=1 // pred_check_branch
      %37 = sbr.rel (0) target = $region17
    $region16: #{net_forward.1} parent=1 // pred_region
      %s39 = ssub.s32 4096, 4096
      %40 = vsyncadd [#allocation5], %s39
      %s41 = sshll.u32 [#allocation6], 4
      %s42 = int_to_ptr.vmem [resolvable:$true] %s41
      %47 = dma.hbm_to_vmem [thread:$0]  %s3, 4096, %s42, [#allocation5], 128, 128, 8
    $region17: #{net_forward.1} parent=1 // pred_fallthru
      _
    // Predicated region
    $region18: #{net_forward.1} parent=1 // pred_check
      _
    $region19: #{net_forward.1} parent=1 // pred_check_branch
      %49 = sbr.rel (0) target = $region21
    $region20: #{net_forward.1} parent=1 // pred_region
      _
    $region21: #{net_forward.1} parent=1 // pred_fallthru
      _
    // Predicated region
    $region22: #{net_forward.1} parent=1 // pred_check
      _
    $region23: #{net_forward.1} parent=1 // pred_check_branch
      %51 = sbr.rel (0) target = $region25
    $region24: #{net_forward.1} parent=1 // pred_region
      %52 = dma.done [#allocation3], 128
    $region25: #{net_forward.1} parent=1 // pred_fallthru
      _
    // Predicated region
    $region26: #{net_forward.1} parent=1 // pred_check
      _
    $region27: #{net_forward.1} parent=1 // pred_check_branch
      %54 = sbr.rel (0) target = $region29
    $region28: #{net_forward.1} parent=1 // pred_region
      %55 = dma.done [#allocation5], 512
    $region29: #{net_forward.1} parent=1 // pred_fallthru
      _
    // Predicated region
    $region30: #{net_forward.1} parent=1 // pred_check
      _
    $region31: #{net_forward.1} parent=1 // pred_check_branch
      %57 = sbr.rel (0) target = $region33
    $region32: #{net_forward.1} parent=1 // pred_region
      %58 = dma.done [#allocation5], 4096
    $region33: #{net_forward.1} parent=1 // pred_fallthru
      _
    %v59 = vld [vmem:[#allocation2] sm:$0xff]
    %v60 = vld [vmem:[#allocation4] sm:$0xff]
    %v61 = vld [vmem:[#allocation4 + $0x8] sm:$0xff]
    %v62 = vld [vmem:[#allocation4 + $0x10] sm:$0xff]
    %v63 = vld [vmem:[#allocation4 + $0x18] sm:$0xff]
    %v64 = vld [vmem:[%s2] sm:$0x3]
    %v66 = vlaneseq
    %v67 = vshrl.u32 %v66, 7
    %v68 = vsub.s32 0, %v67
    %v69 = vrot.slane %v64, %v68
    %v70 = vlaneseq
    %v71 = vshrl.u32 %v70, 7
    %v72 = vsub.s32 1, %v71
    %v73 = vrot.slane %v64, %v72
    %vm76 = vcmask 130048
    %v78 = vsel %vm76, %v59, 0
    %80 = vmatprep.subr.mxu0 %v61
    %81 = vmatpush1.msra.mxu0 %v60
    %82 = vmatprep.subr.mxu0 %v63
    %83 = vmatpush1.msra.mxu0 %v62
    %84 = vmatprep.subr.mxu0 0.0
    %85 = vmatpush1.msra.mxu0 0.0
    %86 = vmatprep.subr.mxu0 0.0
    %87 = vmatpush1.msra.mxu0 0.0
    %88 = vmatprep.subr.mxu0 0.0
    %89 = vmatpush1.msra.mxu0 0.0
    %90 = vmatprep.subr.mxu0 0.0
    %91 = vmatpush1.msra.mxu0 0.0
    %92 = vmatprep.subr.mxu0 0.0
    %93 = vmatpush1.msra.mxu0 0.0
    %94 = vmatprep.subr.mxu0 0.0
    %95 = vmatpush1.msra.mxu0 0.0
    %96 = vmatprep.subr.mxu0 0.0
    %97 = vmatpush1.msra.mxu0 0.0
    %98 = vmatprep.subr.mxu0 0.0
    %99 = vmatpush1.msra.mxu0 0.0
    %100 = vmatprep.subr.mxu0 0.0
    %101 = vmatpush1.msra.mxu0 0.0
    %102 = vmatprep.subr.mxu0 0.0
    %103 = vmatpush1.msra.mxu0 0.0
    %104 = vmatprep.subr.mxu0 0.0
    %105 = vmatpush1.msra.mxu0 0.0
    %106 = vmatprep.subr.mxu0 0.0
    %107 = vmatpush1.msra.mxu0 0.0
    %108 = vmatprep.subr.mxu0 0.0
    %109 = vmatpush1.msra.mxu0 0.0
    %110 = vmatprep.subr.mxu0 0.0
    %111 = vmatpush1.msra.mxu0 0.0
    %112 = vmatprep.subr.mxu0 0.0
    %113 = vmatpush1.msra.mxu0 0.0
    %114 = vmatprep.subr.mxu0 0.0
    %115 = vmatpush1.msra.mxu0 0.0
    %116 = vmatprep.subr.mxu0 0.0
    %117 = vmatpush1.msra.mxu0 0.0
    %118 = vmatprep.subr.mxu0 0.0
    %119 = vmatpush1.msra.mxu0 0.0
    %120 = vmatprep.subr.mxu0 0.0
    %121 = vmatpush1.msra.mxu0 0.0
    %122 = vmatprep.subr.mxu0 0.0
    %123 = vmatpush1.msra.mxu0 0.0
    %124 = vmatprep.subr.mxu0 0.0
    %125 = vmatpush1.msra.mxu0 0.0
    %126 = vmatprep.subr.mxu0 0.0
    %127 = vmatpush1.msra.mxu0 0.0
    %128 = vmatprep.subr.mxu0 0.0
    %129 = vmatpush1.msra.mxu0 0.0
    %130 = vmatprep.subr.mxu0 0.0
    %131 = vmatpush1.msra.mxu0 0.0
    %132 = vmatprep.subr.mxu0 0.0
    %133 = vmatpush1.msra.mxu0 0.0
    %134 = vmatprep.subr.mxu0 0.0
    %135 = vmatpush1.msra.mxu0 0.0
    %136 = vmatprep.subr.mxu0 0.0
    %137 = vmatpush1.msra.mxu0 0.0
    %138 = vmatprep.subr.mxu0 0.0
    %139 = vmatpush1.msra.mxu0 0.0
    %140 = vmatprep.subr.mxu0 0.0
    %141 = vmatpush1.msra.mxu0 0.0
    %142 = vmatprep.subr.mxu0 0.0
    %143 = vmatpush1.msra.mxu0 0.0
    %144 = vmatprep.mubr.f32.mxu0 0.0
    %145 = vmatmul.mubr.f32.gmra.mrb[0].mxu0 %v78
    %v146 = vpop.f32.mrb[0].mxu0
    %v147 = vadd.f32 %v69, %v146
    %v148 = vpop.f32.mrb[0].mxu0
    %v149 = vadd.f32 %v73, %v148
    %150 = vdwg.mxu0
    %v151 = vand.u32 2147483647, %v147
    %vm152 = vcmp.le.f32.partialorder %v151, 0.7853982
    %vm153 = vcmp.lt.s32.totalorder %v147, 0
    %v154 = vand.u32 %v147, 2139095040
    %v155 = vshrl.u32 %v154, 23
    %v156 = vsub.s32 %v155, 127
    %v157 = vand.u32 2147483647, %v147
    %v158 = vand.u32 %v157, 8388607
    %v159 = vor.u32 %v158, 8388608
    %v160 = vsub.s32 0, %v159
    %v161 = vadd.s32 %v156, 1
    %vm162 = vcmp.gt.s32.totalorder %v161, 0
    %v163 = vsel %vm162, %v161, 0
    %v164 = vshrl.u32 %v163, 5
    %v165 = vand.u32 %v163, 31
    %v166 = vsub.s32 32, %v165
    %v167 = vshrl.u32 683565275, %v166
    %v168 = vshll.u32 683565275, %v165
    %v169 = vshrl.u32 2475754826, %v166
    %v170 = vor.u32 %v168, %v169
    %v171 = vshll.u32 2475754826, %v165
    %v172 = vshrl.u32 2131351028, %v166
    %v173 = vor.u32 %v171, %v172
    %v174 = vshll.u32 2131351028, %v165
    %v175 = vshrl.u32 2102212464, %v166
    %v176 = vor.u32 %v174, %v175
    %v177 = vshll.u32 2102212464, %v165
    %v178 = vshrl.u32 920167782, %v166
    %v179 = vor.u32 %v177, %v178
    %v180 = vshll.u32 920167782, %v165
    %v181 = vshrl.u32 1326507024, %v166
    %v182 = vor.u32 %v180, %v181
    %vm183 = vcmp.lt.s32.totalorder %v164, 1
    %vm184 = vcmp.lt.s32.totalorder %v164, 2
    %vm185 = vcmp.lt.s32.totalorder %v164, 3
    %vm186 = vcmp.lt.s32.totalorder %v164, 4
    %v187 = vsel %vm183, %v167, %v170
    %v188 = vsel %vm186, %v176, 2102212464
    %v189 = vsel %vm185, %v173, %v188
    %v190 = vsel %vm184, %v187, %v189
    %v191 = vsel %vm183, %v170, %v173
    %v192 = vsel %vm186, %v179, 920167782
    %v193 = vsel %vm185, %v176, %v192
    %v194 = vsel %vm184, %v191, %v193
    %v195 = vsel %vm183, %v173, %v176
    %v196 = vsel %vm186, %v182, 1326507024
    %v197 = vsel %vm185, %v179, %v196
    %v198 = vsel %vm184, %v195, %v197
    %v199 = vshll.u32 %v159, 8
    %v200 = vmul.u32.u64.compose %v199, %v198
    %v201 = vextract.low.u32 %v200
    %v202 = vextract.high.u32 %v200
    %v203 = vmul.u32.u64.compose %v199, %v194
    %v204 = vextract.low.u32 %v203
    %v205 = vextract.high.u32 %v203
    %v206 = vmul.u32 %v199, %v190
    %v207 = vadd.s32 %v202, %v204
    %vm208 = vc.u32 %v202, %v204
    %v209 = vadd.s32 %v205, 1
    %v210 = vsel %vm208, %v209, %v205
    %v211 = vadd.s32 %v206, %v210
    %v212 = vadd.s32 %v211, 536870912
    %v213 = vshrl.u32 %v212, 30
    %v214 = vshll.u32 %v213, 30
    %v215 = vsub.s32 %v211, %v214
    %vm216 = vcmp.lt.s32.totalorder %v215, 0
    %v217 = vsub.s32 0, %v215
    %v218 = vsel %vm216, %v217, %v215
    %v219 = vclz %v218
    %v220 = vsub.s32 %v219, 2
    %vm221 = vcmp.gt.s32.totalorder 0, %v220
    %v222 = vsel %vm221, 0, %v220
    %v223 = vsub.s32 32, %v222
    %v224 = vshll.u32 %v215, %v222
    %v225 = vshrl.u32 %v207, %v223
    %v226 = vor.u32 %v224, %v225
    %v227 = vsub.s32 4294967266, %v222
    %v228 = vadd.s32 %v227, 127
    %v229 = vshll.u32 %v228, 23
    %v230 = vor.u32 4788187, %v229
    %v231 = vand.u32 2147483647, %v230
    %v233 = vcvt.s32.f32 %v226
    %v234 = vmul.f32 %v233, %v231
    %v235 = vxor.u32 %v234, 2147483648
    %v236 = vsel %vm153, %v235, %v234
    %v237 = vsub.s32 4, %v213
    %v238 = vsel %vm153, %v237, %v213
    %v239 = vsel %vm152, %v147, %v236
    %v240 = vsel %vm152, 0, %v238
    %v241 = vcosq.f32.pop %v239
    %v242 = vsinq.f32.pop %v239
    %vm243 = vweird.f32 %v147
    %v244 = vand.u32 %v240, 3
    %v245 = vadd.s32 %v240, 3
    %v246 = vand.u32 %v245, 3
    %vm247 = vcmp.lt.s32.totalorder %v244, 2
    %vm248 = vcmp.eq.s32.totalorder %v244, 0
    %v249 = vxor.u32 %v242, 2147483648
    %v250 = vsel %vm248, %v241, %v249
    %vm251 = vcmp.eq.s32.totalorder %v244, 2
    %v252 = vxor.u32 %v241, 2147483648
    %v253 = vsel %vm251, %v252, %v242
    %v254 = vsel %vm247, %v250, %v253
    %vm255 = vcmp.lt.s32.totalorder %v246, 2
    %vm256 = vcmp.eq.s32.totalorder %v246, 0
    %v257 = vxor.u32 %v242, 2147483648
    %v258 = vsel %vm256, %v241, %v257
    %vm259 = vcmp.eq.s32.totalorder %v246, 2
    %v260 = vxor.u32 %v241, 2147483648
    %v261 = vsel %vm259, %v260, %v242
    %v262 = vsel %vm255, %v258, %v261
    %v263 = vrcp.pop %v254
    %v264 = vmul.f32 %v262, %v263
    %v265 = vsel %vm243, nan, %v264
    %v266 = vtanh.pop %v149
    %v267 = vld [vmem:[#allocation6] sm:$0xff]
    %v268 = vld [vmem:[#allocation6 + $0x8] sm:$0xff]
    %v269 = vld [vmem:[#allocation6 + $0x10] sm:$0xff]
    %v270 = vld [vmem:[#allocation6 + $0x18] sm:$0xff]
    %v271 = vld [vmem:[#allocation6 + $0x20] sm:$0xff]
    %v272 = vld [vmem:[#allocation6 + $0x28] sm:$0xff]
    %v273 = vld [vmem:[#allocation6 + $0x30] sm:$0xff]
    %v274 = vld [vmem:[#allocation6 + $0x38] sm:$0xff]
    %v275 = vld [vmem:[#allocation6 + $0x40] sm:$0xff]
    %v276 = vld [vmem:[#allocation6 + $0x48] sm:$0xff]
    %v277 = vld [vmem:[#allocation6 + $0x50] sm:$0xff]
    %v278 = vld [vmem:[#allocation6 + $0x58] sm:$0xff]
    %v279 = vld [vmem:[#allocation6 + $0x60] sm:$0xff]
    %v280 = vld [vmem:[#allocation6 + $0x68] sm:$0xff]
    %v281 = vld [vmem:[#allocation6 + $0x70] sm:$0xff]
    %v282 = vld [vmem:[#allocation6 + $0x78] sm:$0xff]
    %v283 = vld [vmem:[#allocation6 + $0x80] sm:$0xff]
    %v284 = vld [vmem:[#allocation6 + $0x88] sm:$0xff]
    %v285 = vld [vmem:[#allocation6 + $0x90] sm:$0xff]
    %v286 = vld [vmem:[#allocation6 + $0x98] sm:$0xff]
    %v287 = vld [vmem:[#allocation6 + $0xa0] sm:$0xff]
    %v288 = vld [vmem:[#allocation6 + $0xa8] sm:$0xff]
    %v289 = vld [vmem:[#allocation6 + $0xb0] sm:$0xff]
    %v290 = vld [vmem:[#allocation6 + $0xb8] sm:$0xff]
    %v291 = vld [vmem:[#allocation6 + $0xc0] sm:$0xff]
    %v292 = vld [vmem:[#allocation6 + $0xc8] sm:$0xff]
    %v293 = vld [vmem:[#allocation6 + $0xd0] sm:$0xff]
    %v294 = vld [vmem:[#allocation6 + $0xd8] sm:$0xff]
    %v295 = vld [vmem:[#allocation6 + $0xe0] sm:$0xff]
    %v296 = vld [vmem:[#allocation6 + $0xe8] sm:$0xff]
    %v297 = vld [vmem:[#allocation6 + $0xf0] sm:$0xff]
    %v298 = vld [vmem:[#allocation6 + $0xf8] sm:$0xff]
    %v299 = vld [vmem:[%s4] sm:$0x1]
    %v301 = vlaneseq
    %v302 = vshrl.u32 %v301, 7
    %v303 = vsub.s32 0, %v302
    %v304 = vrot.slane %v299, %v303
    %306 = vmatprep.subr.mxu0 0.0
    %307 = vmatpush1.msra.mxu0 %v267
    %308 = vmatprep.subr.mxu0 0.0
    %309 = vmatpush1.msra.mxu0 %v268
    %310 = vmatprep.subr.mxu0 0.0
    %311 = vmatpush1.msra.mxu0 %v269
    %312 = vmatprep.subr.mxu0 0.0
    %313 = vmatpush1.msra.mxu0 %v270
    %314 = vmatprep.subr.mxu0 0.0
    %315 = vmatpush1.msra.mxu0 %v271
    %316 = vmatprep.subr.mxu0 0.0
    %317 = vmatpush1.msra.mxu0 %v272
    %318 = vmatprep.subr.mxu0 0.0
    %319 = vmatpush1.msra.mxu0 %v273
    %320 = vmatprep.subr.mxu0 0.0
    %321 = vmatpush1.msra.mxu0 %v274
    %322 = vmatprep.subr.mxu0 0.0
    %323 = vmatpush1.msra.mxu0 %v275
    %324 = vmatprep.subr.mxu0 0.0
    %325 = vmatpush1.msra.mxu0 %v276
    %326 = vmatprep.subr.mxu0 0.0
    %327 = vmatpush1.msra.mxu0 %v277
    %328 = vmatprep.subr.mxu0 0.0
    %329 = vmatpush1.msra.mxu0 %v278
    %330 = vmatprep.subr.mxu0 0.0
    %331 = vmatpush1.msra.mxu0 %v279
    %332 = vmatprep.subr.mxu0 0.0
    %333 = vmatpush1.msra.mxu0 %v280
    %334 = vmatprep.subr.mxu0 0.0
    %335 = vmatpush1.msra.mxu0 %v281
    %336 = vmatprep.subr.mxu0 0.0
    %337 = vmatpush1.msra.mxu0 %v282
    %338 = vmatprep.subr.mxu0 0.0
    %339 = vmatpush1.msra.mxu0 %v283
    %340 = vmatprep.subr.mxu0 0.0
    %341 = vmatpush1.msra.mxu0 %v284
    %342 = vmatprep.subr.mxu0 0.0
    %343 = vmatpush1.msra.mxu0 %v285
    %344 = vmatprep.subr.mxu0 0.0
    %345 = vmatpush1.msra.mxu0 %v286
    %346 = vmatprep.subr.mxu0 0.0
    %347 = vmatpush1.msra.mxu0 %v287
    %348 = vmatprep.subr.mxu0 0.0
    %349 = vmatpush1.msra.mxu0 %v288
    %350 = vmatprep.subr.mxu0 0.0
    %351 = vmatpush1.msra.mxu0 %v289
    %352 = vmatprep.subr.mxu0 0.0
    %353 = vmatpush1.msra.mxu0 %v290
    %354 = vmatprep.subr.mxu0 0.0
    %355 = vmatpush1.msra.mxu0 %v291
    %356 = vmatprep.subr.mxu0 0.0
    %357 = vmatpush1.msra.mxu0 %v292
    %358 = vmatprep.subr.mxu0 0.0
    %359 = vmatpush1.msra.mxu0 %v293
    %360 = vmatprep.subr.mxu0 0.0
    %361 = vmatpush1.msra.mxu0 %v294
    %362 = vmatprep.subr.mxu0 0.0
    %363 = vmatpush1.msra.mxu0 %v295
    %364 = vmatprep.subr.mxu0 0.0
    %365 = vmatpush1.msra.mxu0 %v296
    %366 = vmatprep.subr.mxu0 0.0
    %367 = vmatpush1.msra.mxu0 %v297
    %368 = vmatprep.subr.mxu0 0.0
    %369 = vmatpush1.msra.mxu0 %v298
    %370 = vmatprep.mubr.f32.mxu0 %v266
    %371 = vmatmul.mubr.f32.gmra.mrb[0].mxu0 %v265
    %v372 = vpop.f32.mrb[0].mxu0
    %v373 = vadd.f32 %v304, %v372
    %v374 = vpop.f32.mrb[0].mxu0
    %375 = vdwg.mxu0
    %376 = vst [vmem:[%s5] sm:$0xff] %v373
    // Predicated region
    $region34: #{net_forward.1} parent=1 // pred_check
      _
    $region35: #{net_forward.1} parent=1 // pred_check_branch
      %378 = sbr.rel (0) target = $region37
    $region36: #{net_forward.1} parent=1 // pred_region
      _
    $region37: #{net_forward.1} parent=1 // pred_fallthru
      _
    // Predicated region
    $region38: #{net_forward.1} parent=1 // pred_check
      _
    $region39: #{net_forward.1} parent=1 // pred_check_branch
      %380 = sbr.rel (0) target = $region41
    $region40: #{net_forward.1} parent=1 // pred_region
      _
    $region41: #{net_forward.1} parent=1 // pred_fallthru
      _
    %381 = vsyncpa [#allocation3], 1
    %382 = vsyncpa [#allocation5], 1

</llo_original>
